<compile_context>
chip_gen: v6e
topology: v6e:2x2x1
jax: 0.10.0
libtpu: 0.0.40
codegen_flags: <defaults>
</compile_context>

<pallas_src>
import jax
import jax.numpy as jnp
from jax import lax
from jax.experimental import pallas as pl
from jax.experimental.pallas import tpu as pltpu


# ----------------------------- small helpers --------------------------------

def _round_up(x, m):
    return ((x + m - 1) // m) * m


def _nbytes(shape, dtype):
    n = 1
    for s in shape:
        n *= int(s)
    return n * jnp.dtype(dtype).itemsize


def _vmem_limit(*block_nbytes):
    # VMEM limit computed from the actual per-program block sizes (x2 overall
    # for double-buffering, + headroom), clamped to a value that is legal on
    # v5e/v6e (128 MiB physical) and v7x (64 MiB physical).
    total = sum(block_nbytes)
    return int(min(64 * 1024 * 1024,
                   max(16 * 1024 * 1024, 2 * total + 4 * 1024 * 1024)))


# ------------------------------- kernels -------------------------------------

def _in_proj_kernel(x_ref, wf_ref, wb_ref, bf_ref, bb_ref, gxf_ref, gxb_ref):
    """Row-tiled input projection: gx_dir = x @ W_ih_dir + b_dir (both dirs).

    bf16 MXU operands, f32 accumulation, biases folded, full-ref lane-dense
    stores.  x is read once for both directions.
    """
    x = x_ref[...]                                           # (Rt, nIn) bf16
    gxf_ref[...] = jnp.dot(x, wf_ref[...],
                           preferred_element_type=jnp.float32) + bf_ref[...]
    gxb_ref[...] = jnp.dot(x, wb_ref[...],
                           preferred_element_type=jnp.float32) + bb_ref[...]


def _recurrence_kernel(gxf_ref, gxb_ref, whhf_ref, whhb_ref, recf_ref, recb_ref):
    """Interleaved forward/backward LSTM recurrence on one batch block.

    gx*_ref : (T, Bblk, 4*Hp) f32   precomputed x@W_ih + (b_ih+b_hh), per dir
    whh*_ref: (Hp, 4*Hp)      bf16  hidden->gates weights
    rec*_ref: (T, Bblk, Hp)   bf16  hidden-state history outputs
    Gate math / cell state stay f32; only the MXU operands are bf16.
    """
    T, Bblk, G = gxf_ref.shape
    Hp = G // 4

    def gates_to_hc(gates, c):
        i = jax.nn.sigmoid(gates[:, 0 * Hp:1 * Hp])          # lane-aligned slices
        f = jax.nn.sigmoid(gates[:, 1 * Hp:2 * Hp])
        g = jnp.tanh(gates[:, 2 * Hp:3 * Hp])
        o = jax.nn.sigmoid(gates[:, 3 * Hp:4 * Hp])
        c_new = f * c + i * g
        h_new = o * jnp.tanh(c_new)
        return h_new, c_new

    zeros = jnp.zeros((Bblk, Hp), jnp.float32)

    def body(t, carry):
        hf, cf, hb, cb = carry
        s = T - 1 - t                                        # reversed time (bwd dir)
        # Per-step loads touch only the (Bblk, 4Hp) half of gx actually needed
        # (split per-direction buffers); W_hh is read straight from its ref.
        gf = gxf_ref[t] + jnp.dot(hf.astype(jnp.bfloat16), whhf_ref[...],
                                  preferred_element_type=jnp.float32)
        gb = gxb_ref[s] + jnp.dot(hb.astype(jnp.bfloat16), whhb_ref[...],
                                  preferred_element_type=jnp.float32)
        hf, cf = gates_to_hc(gf, cf)
        hb, cb = gates_to_hc(gb, cb)
        recf_ref[t] = hf.astype(recf_ref.dtype)
        recb_ref[s] = hb.astype(recb_ref.dtype)
        return hf, cf, hb, cb

    # Two independent chains per iteration: one direction's MXU latency hides
    # under the other's gate VPU/EUP math.
    lax.fori_loop(0, T, body, (zeros, zeros, zeros, zeros), unroll=2)


def _out_proj_kernel(rf_ref, rb_ref, wf_ref, wb_ref, be_ref, out_ref):
    """Row-tiled split-embedding output projection (no (T*B, 2H) concat)."""
    out_ref[...] = (
        jnp.dot(rf_ref[...], wf_ref[...], preferred_element_type=jnp.float32)
        + jnp.dot(rb_ref[...], wb_ref[...], preferred_element_type=jnp.float32)
        + be_ref[...]).astype(out_ref.dtype)


# ------------------------------- wrapper --------------------------------------

def bidirectional_lstm(x, params):
    """x: (T, B, nIn) f32 (seq-first, like nn.LSTM default). Returns (T, B, nOut)."""
    T, B, nIn = x.shape
    H = params['whh_f'].shape[0]
    nOut = params['wemb'].shape[1]
    f32, bf16 = jnp.float32, jnp.bfloat16

    # --- lane/sublane-friendly padded sizes (wrapper-side layout plumbing) ---
    Hp = _round_up(max(H, 128), 128)          # lane-dense gate slices / rec stores
    nOutP = _round_up(max(nOut, 128), 128)    # lane-dense (unmasked) final stores
    Bblk = min(32, _round_up(B, 8))           # batch rows per grid program
    Bp = _round_up(max(B, Bblk), Bblk)        # padded batch (padded rows sliced off)
    nblk = Bp // Bblk                         # grid size; "parallel" -> megacore
    G = 4 * Hp
    TB = T * Bp
    Rt = T * Bblk                             # row tile for the projection kernels

    def pad_gate_cols(w):
        """(..., 4*H) -> (..., 4*Hp): zero-pad each of the 4 (i,f,g,o) gate blocks."""
        lead = w.shape[:-1]
        w4 = w.reshape(lead + (4, H))
        w4 = jnp.pad(w4, [(0, 0)] * len(lead) + [(0, 0), (0, Hp - H)])
        return w4.reshape(lead + (4 * Hp,))

    # Padded gate columns have zero weight and zero bias -> pre-activation is
    # exactly 0 -> padded hidden/cell units stay exactly 0 and never perturb
    # the real units.
    wih_f = pad_gate_cols(params['wih_f']).astype(bf16)                      # (nIn, 4Hp)
    wih_b = pad_gate_cols(params['wih_b']).astype(bf16)
    whh_f = jnp.pad(pad_gate_cols(params['whh_f']),
                    ((0, Hp - H), (0, 0))).astype(bf16)                      # (Hp, 4Hp)
    whh_b = jnp.pad(pad_gate_cols(params['whh_b']),
                    ((0, Hp - H), (0, 0))).astype(bf16)
    b_f = pad_gate_cols(params['b_f']).astype(f32)                           # (1, 4Hp)
    b_b = pad_gate_cols(params['b_b']).astype(f32)
    wemb_f = jnp.pad(params['wemb'][:H],
                     ((0, Hp - H), (0, nOutP - nOut))).astype(bf16)          # (Hp, nOutP)
    wemb_b = jnp.pad(params['wemb'][H:],
                     ((0, Hp - H), (0, nOutP - nOut))).astype(bf16)
    bemb = jnp.pad(params['bemb'], ((0, 0), (0, nOutP - nOut))).astype(f32)  # (1, nOutP)

    x_p = jnp.pad(x, ((0, 0), (0, Bp - B), (0, 0))).astype(bf16)             # (T, Bp, nIn)
    x2 = x_p.reshape(TB, nIn)                                                # time-major flatten

    full = lambda a: pl.BlockSpec(a.shape, lambda r, _a=a: (0,) * _a.ndim)

    # ---- stage 1: row-tiled input projection (both directions, x read once) ----
    gx_f, gx_b = pl.pallas_call(
        _in_proj_kernel,
        out_shape=(jax.ShapeDtypeStruct((TB, G), f32),
                   jax.ShapeDtypeStruct((TB, G), f32)),
        grid_spec=pltpu.PrefetchScalarGridSpec(
            num_scalar_prefetch=0, grid=(nblk,),
            in_specs=[pl.BlockSpec((Rt, nIn), lambda r: (r, 0)),
                      full(wih_f), full(wih_b), full(b_f), full(b_b)],
            out_specs=[pl.BlockSpec((Rt, G), lambda r: (r, 0)),
                       pl.BlockSpec((Rt, G), lambda r: (r, 0))]),
        compiler_params=pltpu.CompilerParams(
            dimension_semantics=("parallel",),
            vmem_limit_bytes=_vmem_limit(
                _nbytes((Rt, nIn), bf16), 2 * _nbytes((nIn, G), bf16),
                2 * _nbytes((1, G), f32), 2 * _nbytes((Rt, G), f32))),
    )(x2, wih_f, wih_b, b_f, b_b)

    # ---- stage 2: fwd/bwd-interleaved recurrence, gridded over batch blocks ----
    # gx blocks stream HBM->VMEM per program (auto double-buffered); per-program
    # VMEM is O(T * Bblk), independent of B.
    # TODO(synk): additionally tile over time for very long T (manual DMA of
    # gx/rec windows) so VMEM becomes independent of T as well.
    rec_f, rec_b = pl.pallas_call(
        _recurrence_kernel,
        out_shape=(jax.ShapeDtypeStruct((T, Bp, Hp), bf16),
                   jax.ShapeDtypeStruct((T, Bp, Hp), bf16)),
        grid_spec=pltpu.PrefetchScalarGridSpec(
            num_scalar_prefetch=0, grid=(nblk,),
            in_specs=[pl.BlockSpec((T, Bblk, G), lambda c: (0, c, 0)),
                      pl.BlockSpec((T, Bblk, G), lambda c: (0, c, 0)),
                      full(whh_f), full(whh_b)],
            out_specs=[pl.BlockSpec((T, Bblk, Hp), lambda c: (0, c, 0)),
                       pl.BlockSpec((T, Bblk, Hp), lambda c: (0, c, 0))]),
        compiler_params=pltpu.CompilerParams(
            dimension_semantics=("parallel",),
            vmem_limit_bytes=_vmem_limit(
                2 * _nbytes((T, Bblk, G), f32),
                2 * _nbytes((Hp, G), bf16),
                2 * _nbytes((T, Bblk, Hp), bf16))),
    )(gx_f.reshape(T, Bp, G), gx_b.reshape(T, Bp, G), whh_f, whh_b)

    # ---- stage 3: row-tiled, lane-dense split-embedding output projection ----
    out2 = pl.pallas_call(
        _out_proj_kernel,
        out_shape=jax.ShapeDtypeStruct((TB, nOutP), f32),
        grid_spec=pltpu.PrefetchScalarGridSpec(
            num_scalar_prefetch=0, grid=(nblk,),
            in_specs=[pl.BlockSpec((Rt, Hp), lambda r: (r, 0)),
                      pl.BlockSpec((Rt, Hp), lambda r: (r, 0)),
                      full(wemb_f), full(wemb_b), full(bemb)],
            out_specs=pl.BlockSpec((Rt, nOutP), lambda r: (r, 0))),
        compiler_params=pltpu.CompilerParams(
            dimension_semantics=("parallel",),
            vmem_limit_bytes=_vmem_limit(
                2 * _nbytes((Rt, Hp), bf16), 2 * _nbytes((Hp, nOutP), bf16),
                _nbytes((1, nOutP), f32), _nbytes((Rt, nOutP), f32))),
    )(rec_f.reshape(TB, Hp), rec_b.reshape(TB, Hp), wemb_f, wemb_b, bemb)

    return out2.reshape(T, Bp, nOutP)[:, :B, :nOut]


# --------------------------- params / reference -------------------------------

def init_params(key, nIn, nHidden, nOut):
    """Deterministic init mimicking PyTorch's U(-1/sqrt(H), 1/sqrt(H))."""
    H = nHidden
    ks = jax.random.split(key, 10)
    scale = 1.0 / float(H) ** 0.5

    def u(k, shape):
        return jax.random.uniform(k, shape, jnp.float32, -scale, scale)

    return dict(
        wih_f=u(ks[0], (nIn, 4 * H)),
        whh_f=u(ks[1], (H, 4 * H)),
        b_f=u(ks[2], (1, 4 * H)) + u(ks[3], (1, 4 * H)),   # b_ih + b_hh
        wih_b=u(ks[4], (nIn, 4 * H)),
        whh_b=u(ks[5], (H, 4 * H)),
        b_b=u(ks[6], (1, 4 * H)) + u(ks[7], (1, 4 * H)),
        wemb=u(ks[8], (2 * H, nOut)),
        bemb=u(ks[9], (1, nOut)),
    )


def reference(x, p):
    """Pure-JAX f32 reference matching PyTorch bidirectional LSTM + Linear."""
    T, B, _ = x.shape
    H = p['whh_f'].shape[0]

    def cell(wih, whh, bias):
        def f(carry, x_t):
            h, c = carry
            gates = x_t @ wih + h @ whh + bias[0]
            i, fg, g, o = jnp.split(gates, 4, axis=-1)
            i = jax.nn.sigmoid(i)
            fg = jax.nn.sigmoid(fg)
            g = jnp.tanh(g)
            o = jax.nn.sigmoid(o)
            c = fg * c + i * g
            h = o * jnp.tanh(c)
            return (h, c), h
        return f

    h0 = (jnp.zeros((B, H), jnp.float32), jnp.zeros((B, H), jnp.float32))
    _, hf = lax.scan(cell(p['wih_f'], p['whh_f'], p['b_f']), h0, x)
    _, hb = lax.scan(cell(p['wih_b'], p['whh_b'], p['b_b']), h0, x[::-1])
    hb = hb[::-1]
    rec = jnp.concatenate([hf, hb], axis=-1)               # (T, B, 2H)
    out = rec.reshape(T * B, 2 * H) @ p['wemb'] + p['bemb'][0]
    return out.reshape(T, B, -1)


if __name__ == "__main__":
    T, B, nIn, nHidden, nOut = 8, 2, 16, 32, 16
    key = jax.random.PRNGKey(0)
    kx, kp = jax.random.split(key)
    x = jax.random.normal(kx, (T, B, nIn), jnp.float32)
    params = init_params(kp, nIn, nHidden, nOut)

    out = jax.block_until_ready(bidirectional_lstm(x, params))
    ref = jax.block_until_ready(reference(x, params))

    assert out.shape == (T, B, nOut), out.shape
    # bf16 MXU operands (per perf review) -> tolerance loosened from 5e-3.
    err = float(jnp.max(jnp.abs(out - ref)))
    assert jnp.allclose(out, ref, atol=2e-2, rtol=2e-2), err
    print("KERNEL_OK")
</pallas_src>

<mosaic_0001>
module attributes {stable_mosaic.version = 11 : i64} {
  func.func @_in_proj_kernel(%arg0: i32, %arg1: memref<64x16xbf16, #tpu.memory_space<vmem>>, %arg2: memref<16x512xbf16, #tpu.memory_space<vmem>>, %arg3: memref<16x512xbf16, #tpu.memory_space<vmem>>, %arg4: memref<1x512xf32, #tpu.memory_space<vmem>>, %arg5: memref<1x512xf32, #tpu.memory_space<vmem>>, %arg6: memref<64x512xf32, #tpu.memory_space<vmem>>, %arg7: memref<64x512xf32, #tpu.memory_space<vmem>>) attributes {dimension_semantics = [#tpu.dimension_semantics<parallel>], iteration_bounds = array<i64: 1>, scalar_prefetch = 0 : i64, scratch_operands = 0 : i64, tpu.core_type = #tpu.core_type<tc>, window_params = [{transform_indices = @transform_0, window_bounds = array<i64: 64, 16>}, {pipeline_mode = #tpu.pipeline_mode<synchronous>, transform_indices = @transform_1, window_bounds = array<i64: 16, 512>}, {pipeline_mode = #tpu.pipeline_mode<synchronous>, transform_indices = @transform_2, window_bounds = array<i64: 16, 512>}, {pipeline_mode = #tpu.pipeline_mode<synchronous>, transform_indices = @transform_3, window_bounds = array<i64: 1, 512>}, {pipeline_mode = #tpu.pipeline_mode<synchronous>, transform_indices = @transform_4, window_bounds = array<i64: 1, 512>}, {transform_indices = @transform_5, window_bounds = array<i64: 64, 512>}, {transform_indices = @transform_6, window_bounds = array<i64: 64, 512>}]} {
    %c0 = arith.constant 0 : index
    %c0_0 = arith.constant 0 : index
    %0 = vector.load %arg1[%c0, %c0_0] : memref<64x16xbf16, #tpu.memory_space<vmem>>, vector<64x16xbf16>
    %c0_1 = arith.constant 0 : index
    %c0_2 = arith.constant 0 : index
    %1 = vector.load %arg2[%c0_1, %c0_2] : memref<16x512xbf16, #tpu.memory_space<vmem>>, vector<16x512xbf16>
    %cst = arith.constant dense<0.000000e+00> : vector<64x512xf32>
    %2 = tpu.matmul %0, %1, %cst {dimension_numbers = #tpu.dot_dimension_numbers<[1], [0], [0], [1], [0, 0, 1, 1], [], []>} : vector<64x16xbf16>, vector<16x512xbf16>, vector<64x512xf32> -> vector<64x512xf32>
    %c0_3 = arith.constant 0 : index
    %c0_4 = arith.constant 0 : index
    %3 = vector.load %arg4[%c0_3, %c0_4] : memref<1x512xf32, #tpu.memory_space<vmem>>, vector<1x512xf32>
    %4 = vector.broadcast %3 : vector<1x512xf32> to vector<64x512xf32>
    %5 = arith.addf %2, %4 : vector<64x512xf32>
    %c0_5 = arith.constant 0 : index
    %c0_6 = arith.constant 0 : index
    %6 = vector.load %arg6[%c0_5, %c0_6] : memref<64x512xf32, #tpu.memory_space<vmem>>, vector<64x512xf32>
    tpu.vector_store %arg6[%c0_5, %c0_6], %5 {strides = array<i32>} : memref<64x512xf32, #tpu.memory_space<vmem>>, vector<64x512xf32>,
    %c0_7 = arith.constant 0 : index
    %c0_8 = arith.constant 0 : index
    %7 = vector.load %arg3[%c0_7, %c0_8] : memref<16x512xbf16, #tpu.memory_space<vmem>>, vector<16x512xbf16>
    %cst_9 = arith.constant dense<0.000000e+00> : vector<64x512xf32>
    %8 = tpu.matmul %0, %7, %cst_9 {dimension_numbers = #tpu.dot_dimension_numbers<[1], [0], [0], [1], [0, 0, 1, 1], [], []>} : vector<64x16xbf16>, vector<16x512xbf16>, vector<64x512xf32> -> vector<64x512xf32>
    %c0_10 = arith.constant 0 : index
    %c0_11 = arith.constant 0 : index
    %9 = vector.load %arg5[%c0_10, %c0_11] : memref<1x512xf32, #tpu.memory_space<vmem>>, vector<1x512xf32>
    %10 = vector.broadcast %9 : vector<1x512xf32> to vector<64x512xf32>
    %11 = arith.addf %8, %10 : vector<64x512xf32>
    %c0_12 = arith.constant 0 : index
    %c0_13 = arith.constant 0 : index
    %12 = vector.load %arg7[%c0_12, %c0_13] : memref<64x512xf32, #tpu.memory_space<vmem>>, vector<64x512xf32>
    tpu.vector_store %arg7[%c0_12, %c0_13], %11 {strides = array<i32>} : memref<64x512xf32, #tpu.memory_space<vmem>>, vector<64x512xf32>,
    return
  }
  func.func @transform_0(%arg0: i32) -> (i32, i32) {
    %c0_i32 = arith.constant 0 : i32
    %c0_i32_0 = arith.constant 0 : i32
    return %arg0, %c0_i32 : i32, i32
  }
  func.func @transform_1(%arg0: i32) -> (i32, i32) {
    %c0_i32 = arith.constant 0 : i32
    %c0_i32_0 = arith.constant 0 : i32
    %c0_i32_1 = arith.constant 0 : i32
    return %c0_i32, %c0_i32_0 : i32, i32
  }
  func.func @transform_2(%arg0: i32) -> (i32, i32) {
    %c0_i32 = arith.constant 0 : i32
    %c0_i32_0 = arith.constant 0 : i32
    %c0_i32_1 = arith.constant 0 : i32
    return %c0_i32, %c0_i32_0 : i32, i32
  }
  func.func @transform_3(%arg0: i32) -> (i32, i32) {
    %c0_i32 = arith.constant 0 : i32
    %c0_i32_0 = arith.constant 0 : i32
    %c0_i32_1 = arith.constant 0 : i32
    return %c0_i32, %c0_i32_0 : i32, i32
  }
  func.func @transform_4(%arg0: i32) -> (i32, i32) {
    %c0_i32 = arith.constant 0 : i32
    %c0_i32_0 = arith.constant 0 : i32
    %c0_i32_1 = arith.constant 0 : i32
    return %c0_i32, %c0_i32_0 : i32, i32
  }
  func.func @transform_5(%arg0: i32) -> (i32, i32) {
    %c0_i32 = arith.constant 0 : i32
    %c0_i32_0 = arith.constant 0 : i32
    return %arg0, %c0_i32 : i32, i32
  }
  func.func @transform_6(%arg0: i32) -> (i32, i32) {
    %c0_i32 = arith.constant 0 : i32
    %c0_i32_0 = arith.constant 0 : i32
    return %arg0, %c0_i32 : i32, i32
  }
}

</mosaic_0001>

<llo_original>
// kernel: tpu_custom_call.1
$region0: #{tpu_custom_call.1}
  #allocation0 [shape = 'u32[]', space=smem, size = 0x4, offset = 0x4, fixed_abs, tag = 'smem constant byte address 0x4 - core index']
  #allocation1 [shape = 'u32[144,128]{1,0:T(1,128)}', space=vmem, size = 0x12000, scoped, tag = 'internal scratch']
  %s0 = inlined_call_operand.vmem [shape: bf16[64,16], index: 0, kind: input, shape index: {}]
  %s1 = inlined_call_operand.vmem [shape: bf16[16,512], index: 1, kind: input, shape index: {}]
  %s2 = inlined_call_operand.hbm [shape: bf16[16,512], index: 2, kind: input, shape index: {}]
  %s3 = inlined_call_operand.vmem [shape: f32[1,512], index: 3, kind: input, shape index: {}]
  %s4 = inlined_call_operand.vmem [shape: f32[1,512], index: 4, kind: input, shape index: {}]
  %s5 = inlined_call_operand.hbm [shape: f32[64,512], index: 5, kind: output, shape index: {0}]
  %s6 = inlined_call_operand.hbm [shape: f32[64,512], index: 6, kind: output, shape index: {1}]
  %7 = xla_tuple %s5, %s6
  %s8 = sld [smem:[#allocation0]]
  $region42: #{tpu_custom_call.1} parent=0
    _
  %s10 = ssub.s32 1, %s8
  %s11 = scalar_select 0, %s10, %s8
  $region1: #{tpu_custom_call.1} parent=0
    #allocation2 [shape = 'u8[16384]{0}', space=vmem, size = 0x4000, scoped, tag = 'input window, operand 2, single buffered']
    #allocation3 [shape = 's32[1]{0}', space=sflag, size = 0x4, scoped, tag = 'scoped memory for tpu_custom_call.1']
    #allocation4 [shape = 's32[1]{0}', space=sflag, size = 0x4, scoped, tag = 'scoped memory for tpu_custom_call.1']
    #allocation5 [shape = 'u8[131072]{0}', space=vmem, size = 0x20000, scoped, tag = 'output window, operand 0, single buffered']
    #allocation6 [shape = 'u8[131072]{0}', space=vmem, size = 0x20000, scoped, tag = 'output window, operand 1, single buffered']
    #allocation7 [shape = 's32[1]{0}', space=sflag, size = 0x4, scoped, tag = 'scoped memory for tpu_custom_call.1']
    %12 = vsyncpa [#allocation3], 0
    %13 = vsyncpa [#allocation4], 0
    %14 = vsyncpa [#allocation7], 0
    // Predicated region
    $region2: #{tpu_custom_call.1} parent=1 // pred_check
      _
    $region3: #{tpu_custom_call.1} parent=1 // pred_check_branch
      %16 = sbr.rel (0) target = $region5
    $region4: #{tpu_custom_call.1} parent=1 // pred_region
      _
    $region5: #{tpu_custom_call.1} parent=1 // pred_fallthru
      _
    // Predicated region
    $region6: #{tpu_custom_call.1} parent=1 // pred_check
      _
    $region7: #{tpu_custom_call.1} parent=1 // pred_check_branch
      %18 = sbr.rel (0) target = $region9
    $region8: #{tpu_custom_call.1} parent=1 // pred_region
      _
    $region9: #{tpu_custom_call.1} parent=1 // pred_fallthru
      _
    // Predicated region
    $region10: #{tpu_custom_call.1} parent=1 // pred_check
      _
    $region11: #{tpu_custom_call.1} parent=1 // pred_check_branch
      %20 = sbr.rel (0) target = $region13
    $region12: #{tpu_custom_call.1} parent=1 // pred_region
      %s22 = ssub.s32 512, 512
      %23 = vsyncadd [#allocation3], %s22
      %s24 = sshll.u32 [#allocation2], 4
      %s25 = int_to_ptr.vmem [resolvable:$true] %s24
      %30 = dma.hbm_to_vmem [thread:$0]  %s2, 512, %s25, [#allocation3], 256, 256, 16
    $region13: #{tpu_custom_call.1} parent=1 // pred_fallthru
      _
    // Predicated region
    $region14: #{tpu_custom_call.1} parent=1 // pred_check
      _
    $region15: #{tpu_custom_call.1} parent=1 // pred_check_branch
      %32 = sbr.rel (0) target = $region17
    $region16: #{tpu_custom_call.1} parent=1 // pred_region
      _
    $region17: #{tpu_custom_call.1} parent=1 // pred_fallthru
      _
    // Predicated region
    $region18: #{tpu_custom_call.1} parent=1 // pred_check
      _
    $region19: #{tpu_custom_call.1} parent=1 // pred_check_branch
      %34 = sbr.rel (0) target = $region21
    $region20: #{tpu_custom_call.1} parent=1 // pred_region
      _
    $region21: #{tpu_custom_call.1} parent=1 // pred_fallthru
      _
    // Predicated region
    $region22: #{tpu_custom_call.1} parent=1 // pred_check
      _
    $region23: #{tpu_custom_call.1} parent=1 // pred_check_branch
      %36 = sbr.rel (0) target = $region25
    $region24: #{tpu_custom_call.1} parent=1 // pred_region
      %37 = dma.done [#allocation3], 512
    $region25: #{tpu_custom_call.1} parent=1 // pred_fallthru
      _
    %v39 = vld [vmem:[%s0] sm:$0xf]
    %v40 = vld [vmem:[%s0 + $0x4] sm:$0xf]
    %v41 = vld [vmem:[%s0 + $0x8] sm:$0xf]
    %v42 = vld [vmem:[%s0 + $0xc] sm:$0xf]
    %v43 = vld [vmem:[%s0 + $0x10] sm:$0xf]
    %v44 = vld [vmem:[%s0 + $0x14] sm:$0xf]
    %v45 = vld [vmem:[%s0 + $0x18] sm:$0xf]
    %v46 = vld [vmem:[%s0 + $0x1c] sm:$0xf]
    %v47 = vld [vmem:[%s1] sm:$0xff]
    %v48 = vld [vmem:[%s1 + $0x8] sm:$0xff]
    %v49 = vld [vmem:[%s1 + $0x10] sm:$0xff]
    %v50 = vld [vmem:[%s1 + $0x18] sm:$0xff]
    %v51 = vld [vmem:[%s3] sm:$0xf]
    %v53 = vlaneseq
    %v54 = vshrl.u32 %v53, 7
    %v55 = vsub.s32 0, %v54
    %v56 = vrot.slane %v51, %v55
    %v57 = vlaneseq
    %v58 = vshrl.u32 %v57, 7
    %v59 = vsub.s32 1, %v58
    %v60 = vrot.slane %v51, %v59
    %v61 = vlaneseq
    %v62 = vshrl.u32 %v61, 7
    %v63 = vsub.s32 2, %v62
    %v64 = vrot.slane %v51, %v63
    %v65 = vlaneseq
    %v66 = vshrl.u32 %v65, 7
    %v67 = vsub.s32 3, %v66
    %v68 = vrot.slane %v51, %v67
    %v81 = vunpack.c.l.b16 %v39
    %v82 = vunpack.c.l.b16 %v40
    %v83 = vunpack.c.l.b16 %v41
    %v84 = vunpack.c.l.b16 %v42
    %v85 = vunpack.c.l.b16 %v43
    %v86 = vunpack.c.l.b16 %v44
    %v87 = vunpack.c.l.b16 %v45
    %v88 = vunpack.c.l.b16 %v46
    %v89 = vpack.c.b16 %v82, %v81
    %v90 = vpack.c.b16 %v84, %v83
    %v91 = vpack.c.b16 %v86, %v85
    %v92 = vpack.c.b16 %v88, %v87
    %v97 = vunpack.c.l.b16 %v47
    %v98 = vunpack.c.h.b16 %v47
    %v99 = vunpack.c.l.b16 %v48
    %v100 = vunpack.c.h.b16 %v48
    %v101 = vunpack.c.l.b16 %v49
    %v102 = vunpack.c.h.b16 %v49
    %v103 = vunpack.c.l.b16 %v50
    %v104 = vunpack.c.h.b16 %v50
    %v105 = vpack.c.b16 %v101, %v97
    %v106 = vpack.c.b16 %v102, %v98
    %v107 = vpack.c.b16 %v103, %v99
    %v108 = vpack.c.b16 %v104, %v100
    %vm113 = vcmask 130048
    %v115 = vsel %vm113, %v89, 0
    %v118 = vsel %vm113, %v90, 0
    %v121 = vsel %vm113, %v91, 0
    %v124 = vsel %vm113, %v92, 0
    %126 = vmatprep.subr.bf16.mxu0 0
    %127 = vmatpush1.bf16.msra.mxu0 0
    %128 = vmatprep.subr.bf16.mxu0 0
    %129 = vmatpush1.bf16.msra.mxu0 0
    %130 = vmatprep.subr.bf16.mxu0 0
    %131 = vmatpush1.bf16.msra.mxu0 0
    %132 = vmatprep.subr.bf16.mxu0 0
    %133 = vmatpush1.bf16.msra.mxu0 0
    %134 = vmatprep.subr.bf16.mxu0 0
    %135 = vmatpush1.bf16.msra.mxu0 0
    %136 = vmatprep.subr.bf16.mxu0 0
    %137 = vmatpush1.bf16.msra.mxu0 0
    %138 = vmatprep.subr.bf16.mxu0 0
    %139 = vmatpush1.bf16.msra.mxu0 0
    %140 = vmatprep.subr.bf16.mxu0 %v106
    %141 = vmatpush1.bf16.msra.mxu0 %v105
    %142 = vmatprep.subr.bf16.mxu0 0
    %143 = vmatpush2.bf16.msra.mxu0 0
    %144 = vmatprep.subr.bf16.mxu0 0
    %145 = vmatpush2.bf16.msra.mxu0 0
    %146 = vmatprep.subr.bf16.mxu0 0
    %147 = vmatpush2.bf16.msra.mxu0 0
    %148 = vmatprep.subr.bf16.mxu0 0
    %149 = vmatpush2.bf16.msra.mxu0 0
    %150 = vmatprep.subr.bf16.mxu0 0
    %151 = vmatpush2.bf16.msra.mxu0 0
    %152 = vmatprep.subr.bf16.mxu0 0
    %153 = vmatpush2.bf16.msra.mxu0 0
    %154 = vmatprep.subr.bf16.mxu0 0
    %155 = vmatpush2.bf16.msra.mxu0 0
    %156 = vmatprep.subr.bf16.mxu0 0
    %157 = vmatpush2.bf16.msra.mxu0 0
    %158 = vmatprep.mubr.bf16.mxu0 0
    %159 = vmatmul.mubr.bf16.gmra.mxu0 %v115
    %v160 = vpop.f32.mrf.mxu0
    %v161 = vadd.f32 %v56, %v160
    %v162 = vpop.f32.mrf.mxu0
    %v163 = vadd.f32 %v60, %v162
    %v164 = vpop.f32.mrf.mxu0
    %v165 = vadd.f32 %v56, %v164
    %v166 = vpop.f32.mrf.mxu0
    %v167 = vadd.f32 %v60, %v166
    %168 = vmatprep.mubr.bf16.mxu0 0
    %169 = vmatmul.mubr.bf16.gmra.mxu0 %v118
    %v170 = vpop.f32.mrf.mxu0
    %v171 = vadd.f32 %v56, %v170
    %v172 = vpop.f32.mrf.mxu0
    %v173 = vadd.f32 %v60, %v172
    %v174 = vpop.f32.mrf.mxu0
    %v175 = vadd.f32 %v56, %v174
    %v176 = vpop.f32.mrf.mxu0
    %v177 = vadd.f32 %v60, %v176
    %178 = vmatprep.mubr.bf16.mxu0 0
    %179 = vmatmul.mubr.bf16.gmra.mxu0 %v121
    %v180 = vpop.f32.mrf.mxu0
    %v181 = vadd.f32 %v56, %v180
    %v182 = vpop.f32.mrf.mxu0
    %v183 = vadd.f32 %v60, %v182
    %v184 = vpop.f32.mrf.mxu0
    %v185 = vadd.f32 %v56, %v184
    %v186 = vpop.f32.mrf.mxu0
    %v187 = vadd.f32 %v60, %v186
    %188 = vmatprep.mubr.bf16.mxu0 0
    %189 = vmatmul.mubr.bf16.gmra.mxu0 %v124
    %v190 = vpop.f32.mrf.mxu0
    %v191 = vadd.f32 %v56, %v190
    %v192 = vpop.f32.mrf.mxu0
    %v193 = vadd.f32 %v60, %v192
    %v194 = vpop.f32.mrf.mxu0
    %v195 = vadd.f32 %v56, %v194
    %v196 = vpop.f32.mrf.mxu0
    %v197 = vadd.f32 %v60, %v196
    %198 = vdwg.mxu0
    %199 = vmatprep.subr.bf16.mxu0 0
    %200 = vmatpush1.bf16.msra.mxu0 0
    %201 = vmatprep.subr.bf16.mxu0 0
    %202 = vmatpush1.bf16.msra.mxu0 0
    %203 = vmatprep.subr.bf16.mxu0 0
    %204 = vmatpush1.bf16.msra.mxu0 0
    %205 = vmatprep.subr.bf16.mxu0 0
    %206 = vmatpush1.bf16.msra.mxu0 0
    %207 = vmatprep.subr.bf16.mxu0 0
    %208 = vmatpush1.bf16.msra.mxu0 0
    %209 = vmatprep.subr.bf16.mxu0 0
    %210 = vmatpush1.bf16.msra.mxu0 0
    %211 = vmatprep.subr.bf16.mxu0 0
    %212 = vmatpush1.bf16.msra.mxu0 0
    %213 = vmatprep.subr.bf16.mxu0 %v108
    %214 = vmatpush1.bf16.msra.mxu0 %v107
    %215 = vmatprep.subr.bf16.mxu0 0
    %216 = vmatpush2.bf16.msra.mxu0 0
    %217 = vmatprep.subr.bf16.mxu0 0
    %218 = vmatpush2.bf16.msra.mxu0 0
    %219 = vmatprep.subr.bf16.mxu0 0
    %220 = vmatpush2.bf16.msra.mxu0 0
    %221 = vmatprep.subr.bf16.mxu0 0
    %222 = vmatpush2.bf16.msra.mxu0 0
    %223 = vmatprep.subr.bf16.mxu0 0
    %224 = vmatpush2.bf16.msra.mxu0 0
    %225 = vmatprep.subr.bf16.mxu0 0
    %226 = vmatpush2.bf16.msra.mxu0 0
    %227 = vmatprep.subr.bf16.mxu0 0
    %228 = vmatpush2.bf16.msra.mxu0 0
    %229 = vmatprep.subr.bf16.mxu0 0
    %230 = vmatpush2.bf16.msra.mxu0 0
    %231 = vmatprep.mubr.bf16.mxu0 0
    %232 = vmatmul.mubr.bf16.gmra.mxu0 %v115
    %v233 = vpop.f32.mrf.mxu0
    %v234 = vadd.f32 %v64, %v233
    %v235 = vpop.f32.mrf.mxu0
    %v236 = vadd.f32 %v68, %v235
    %v237 = vpop.f32.mrf.mxu0
    %v238 = vadd.f32 %v64, %v237
    %v239 = vpop.f32.mrf.mxu0
    %v240 = vadd.f32 %v68, %v239
    %241 = vmatprep.mubr.bf16.mxu0 0
    %242 = vmatmul.mubr.bf16.gmra.mxu0 %v118
    %v243 = vpop.f32.mrf.mxu0
    %v244 = vadd.f32 %v64, %v243
    %v245 = vpop.f32.mrf.mxu0
    %v246 = vadd.f32 %v68, %v245
    %v247 = vpop.f32.mrf.mxu0
    %v248 = vadd.f32 %v64, %v247
    %v249 = vpop.f32.mrf.mxu0
    %v250 = vadd.f32 %v68, %v249
    %251 = vmatprep.mubr.bf16.mxu0 0
    %252 = vmatmul.mubr.bf16.gmra.mxu0 %v121
    %v253 = vpop.f32.mrf.mxu0
    %v254 = vadd.f32 %v64, %v253
    %v255 = vpop.f32.mrf.mxu0
    %v256 = vadd.f32 %v68, %v255
    %v257 = vpop.f32.mrf.mxu0
    %v258 = vadd.f32 %v64, %v257
    %v259 = vpop.f32.mrf.mxu0
    %v260 = vadd.f32 %v68, %v259
    %261 = vmatprep.mubr.bf16.mxu0 0
    %262 = vmatmul.mubr.bf16.gmra.mxu0 %v124
    %v263 = vpop.f32.mrf.mxu0
    %v264 = vadd.f32 %v64, %v263
    %v265 = vpop.f32.mrf.mxu0
    %v266 = vadd.f32 %v68, %v265
    %v267 = vpop.f32.mrf.mxu0
    %v268 = vadd.f32 %v64, %v267
    %v269 = vpop.f32.mrf.mxu0
    %v270 = vadd.f32 %v68, %v269
    %271 = vdwg.mxu0
    %272 = vst [vmem:[#allocation5] sm:$0xff] %v161
    %273 = vst [vmem:[#allocation5 + $0x8] sm:$0xff] %v163
    %274 = vst [vmem:[#allocation5 + $0x10] sm:$0xff] %v234
    %275 = vst [vmem:[#allocation5 + $0x18] sm:$0xff] %v236
    %276 = vst [vmem:[#allocation5 + $0x20] sm:$0xff] %v165
    %277 = vst [vmem:[#allocation5 + $0x28] sm:$0xff] %v167
    %278 = vst [vmem:[#allocation5 + $0x30] sm:$0xff] %v238
    %279 = vst [vmem:[#allocation5 + $0x38] sm:$0xff] %v240
    %280 = vst [vmem:[#allocation5 + $0x40] sm:$0xff] %v171
    %281 = vst [vmem:[#allocation5 + $0x48] sm:$0xff] %v173
    %282 = vst [vmem:[#allocation5 + $0x50] sm:$0xff] %v244
    %283 = vst [vmem:[#allocation5 + $0x58] sm:$0xff] %v246
    %284 = vst [vmem:[#allocation5 + $0x60] sm:$0xff] %v175
    %285 = vst [vmem:[#allocation5 + $0x68] sm:$0xff] %v177
    %286 = vst [vmem:[#allocation5 + $0x70] sm:$0xff] %v248
    %287 = vst [vmem:[#allocation5 + $0x78] sm:$0xff] %v250
    %288 = vst [vmem:[#allocation5 + $0x80] sm:$0xff] %v181
    %289 = vst [vmem:[#allocation5 + $0x88] sm:$0xff] %v183
    %290 = vst [vmem:[#allocation5 + $0x90] sm:$0xff] %v254
    %291 = vst [vmem:[#allocation5 + $0x98] sm:$0xff] %v256
    %292 = vst [vmem:[#allocation5 + $0xa0] sm:$0xff] %v185
    %293 = vst [vmem:[#allocation5 + $0xa8] sm:$0xff] %v187
    %294 = vst [vmem:[#allocation5 + $0xb0] sm:$0xff] %v258
    %295 = vst [vmem:[#allocation5 + $0xb8] sm:$0xff] %v260
    %296 = vst [vmem:[#allocation5 + $0xc0] sm:$0xff] %v191
    %297 = vst [vmem:[#allocation5 + $0xc8] sm:$0xff] %v193
    %298 = vst [vmem:[#allocation5 + $0xd0] sm:$0xff] %v264
    %299 = vst [vmem:[#allocation5 + $0xd8] sm:$0xff] %v266
    %300 = vst [vmem:[#allocation5 + $0xe0] sm:$0xff] %v195
    %301 = vst [vmem:[#allocation5 + $0xe8] sm:$0xff] %v197
    %302 = vst [vmem:[#allocation5 + $0xf0] sm:$0xff] %v268
    %303 = vst [vmem:[#allocation5 + $0xf8] sm:$0xff] %v270
    %v304 = vld [vmem:[#allocation2] sm:$0xff]
    %v305 = vld [vmem:[#allocation2 + $0x8] sm:$0xff]
    %v306 = vld [vmem:[#allocation2 + $0x10] sm:$0xff]
    %v307 = vld [vmem:[#allocation2 + $0x18] sm:$0xff]
    %v308 = vld [vmem:[%s4] sm:$0xf]
    %v310 = vlaneseq
    %v311 = vshrl.u32 %v310, 7
    %v312 = vsub.s32 0, %v311
    %v313 = vrot.slane %v308, %v312
    %v314 = vlaneseq
    %v315 = vshrl.u32 %v314, 7
    %v316 = vsub.s32 1, %v315
    %v317 = vrot.slane %v308, %v316
    %v318 = vlaneseq
    %v319 = vshrl.u32 %v318, 7
    %v320 = vsub.s32 2, %v319
    %v321 = vrot.slane %v308, %v320
    %v322 = vlaneseq
    %v323 = vshrl.u32 %v322, 7
    %v324 = vsub.s32 3, %v323
    %v325 = vrot.slane %v308, %v324
    %v334 = vunpack.c.l.b16 %v304
    %v335 = vunpack.c.h.b16 %v304
    %v336 = vunpack.c.l.b16 %v305
    %v337 = vunpack.c.h.b16 %v305
    %v338 = vunpack.c.l.b16 %v306
    %v339 = vunpack.c.h.b16 %v306
    %v340 = vunpack.c.l.b16 %v307
    %v341 = vunpack.c.h.b16 %v307
    %v342 = vpack.c.b16 %v338, %v334
    %v343 = vpack.c.b16 %v339, %v335
    %v344 = vpack.c.b16 %v340, %v336
    %v345 = vpack.c.b16 %v341, %v337
    %350 = vmatprep.subr.bf16.mxu0 0
    %351 = vmatpush1.bf16.msra.mxu0 0
    %352 = vmatprep.subr.bf16.mxu0 0
    %353 = vmatpush1.bf16.msra.mxu0 0
    %354 = vmatprep.subr.bf16.mxu0 0
    %355 = vmatpush1.bf16.msra.mxu0 0
    %356 = vmatprep.subr.bf16.mxu0 0
    %357 = vmatpush1.bf16.msra.mxu0 0
    %358 = vmatprep.subr.bf16.mxu0 0
    %359 = vmatpush1.bf16.msra.mxu0 0
    %360 = vmatprep.subr.bf16.mxu0 0
    %361 = vmatpush1.bf16.msra.mxu0 0
    %362 = vmatprep.subr.bf16.mxu0 0
    %363 = vmatpush1.bf16.msra.mxu0 0
    %364 = vmatprep.subr.bf16.mxu0 %v343
    %365 = vmatpush1.bf16.msra.mxu0 %v342
    %366 = vmatprep.subr.bf16.mxu0 0
    %367 = vmatpush2.bf16.msra.mxu0 0
    %368 = vmatprep.subr.bf16.mxu0 0
    %369 = vmatpush2.bf16.msra.mxu0 0
    %370 = vmatprep.subr.bf16.mxu0 0
    %371 = vmatpush2.bf16.msra.mxu0 0
    %372 = vmatprep.subr.bf16.mxu0 0
    %373 = vmatpush2.bf16.msra.mxu0 0
    %374 = vmatprep.subr.bf16.mxu0 0
    %375 = vmatpush2.bf16.msra.mxu0 0
    %376 = vmatprep.subr.bf16.mxu0 0
    %377 = vmatpush2.bf16.msra.mxu0 0
    %378 = vmatprep.subr.bf16.mxu0 0
    %379 = vmatpush2.bf16.msra.mxu0 0
    %380 = vmatprep.subr.bf16.mxu0 0
    %381 = vmatpush2.bf16.msra.mxu0 0
    %382 = vmatprep.mubr.bf16.mxu0 0
    %383 = vmatmul.mubr.bf16.gmra.mxu0 %v115
    %v384 = vpop.f32.mrf.mxu0
    %v385 = vadd.f32 %v313, %v384
    %v386 = vpop.f32.mrf.mxu0
    %v387 = vadd.f32 %v317, %v386
    %v388 = vpop.f32.mrf.mxu0
    %v389 = vadd.f32 %v313, %v388
    %v390 = vpop.f32.mrf.mxu0
    %v391 = vadd.f32 %v317, %v390
    %392 = vmatprep.mubr.bf16.mxu0 0
    %393 = vmatmul.mubr.bf16.gmra.mxu0 %v118
    %v394 = vpop.f32.mrf.mxu0
    %v395 = vadd.f32 %v313, %v394
    %v396 = vpop.f32.mrf.mxu0
    %v397 = vadd.f32 %v317, %v396
    %v398 = vpop.f32.mrf.mxu0
    %v399 = vadd.f32 %v313, %v398
    %v400 = vpop.f32.mrf.mxu0
    %v401 = vadd.f32 %v317, %v400
    %402 = vmatprep.mubr.bf16.mxu0 0
    %403 = vmatmul.mubr.bf16.gmra.mxu0 %v121
    %v404 = vpop.f32.mrf.mxu0
    %v405 = vadd.f32 %v313, %v404
    %v406 = vpop.f32.mrf.mxu0
    %v407 = vadd.f32 %v317, %v406
    %v408 = vpop.f32.mrf.mxu0
    %v409 = vadd.f32 %v313, %v408
    %v410 = vpop.f32.mrf.mxu0
    %v411 = vadd.f32 %v317, %v410
    %412 = vmatprep.mubr.bf16.mxu0 0
    %413 = vmatmul.mubr.bf16.gmra.mxu0 %v124
    %v414 = vpop.f32.mrf.mxu0
    %v415 = vadd.f32 %v313, %v414
    %v416 = vpop.f32.mrf.mxu0
    %v417 = vadd.f32 %v317, %v416
    %v418 = vpop.f32.mrf.mxu0
    %v419 = vadd.f32 %v313, %v418
    %v420 = vpop.f32.mrf.mxu0
    %v421 = vadd.f32 %v317, %v420
    %422 = vdwg.mxu0
    %423 = vmatprep.subr.bf16.mxu0 0
    %424 = vmatpush1.bf16.msra.mxu0 0
    %425 = vmatprep.subr.bf16.mxu0 0
    %426 = vmatpush1.bf16.msra.mxu0 0
    %427 = vmatprep.subr.bf16.mxu0 0
    %428 = vmatpush1.bf16.msra.mxu0 0
    %429 = vmatprep.subr.bf16.mxu0 0
    %430 = vmatpush1.bf16.msra.mxu0 0
    %431 = vmatprep.subr.bf16.mxu0 0
    %432 = vmatpush1.bf16.msra.mxu0 0
    %433 = vmatprep.subr.bf16.mxu0 0
    %434 = vmatpush1.bf16.msra.mxu0 0
    %435 = vmatprep.subr.bf16.mxu0 0
    %436 = vmatpush1.bf16.msra.mxu0 0
    %437 = vmatprep.subr.bf16.mxu0 %v345
    %438 = vmatpush1.bf16.msra.mxu0 %v344
    %439 = vmatprep.subr.bf16.mxu0 0
    %440 = vmatpush2.bf16.msra.mxu0 0
    %441 = vmatprep.subr.bf16.mxu0 0
    %442 = vmatpush2.bf16.msra.mxu0 0
    %443 = vmatprep.subr.bf16.mxu0 0
    %444 = vmatpush2.bf16.msra.mxu0 0
    %445 = vmatprep.subr.bf16.mxu0 0
    %446 = vmatpush2.bf16.msra.mxu0 0
    %447 = vmatprep.subr.bf16.mxu0 0
    %448 = vmatpush2.bf16.msra.mxu0 0
    %449 = vmatprep.subr.bf16.mxu0 0
    %450 = vmatpush2.bf16.msra.mxu0 0
    %451 = vmatprep.subr.bf16.mxu0 0
    %452 = vmatpush2.bf16.msra.mxu0 0
    %453 = vmatprep.subr.bf16.mxu0 0
    %454 = vmatpush2.bf16.msra.mxu0 0
    %455 = vmatprep.mubr.bf16.mxu0 0
    %456 = vmatmul.mubr.bf16.gmra.mxu0 %v115
    %v457 = vpop.f32.mrf.mxu0
    %v458 = vadd.f32 %v321, %v457
    %v459 = vpop.f32.mrf.mxu0
    %v460 = vadd.f32 %v325, %v459
    %v461 = vpop.f32.mrf.mxu0
    %v462 = vadd.f32 %v321, %v461
    %v463 = vpop.f32.mrf.mxu0
    %v464 = vadd.f32 %v325, %v463
    %465 = vmatprep.mubr.bf16.mxu0 0
    %466 = vmatmul.mubr.bf16.gmra.mxu0 %v118
    %v467 = vpop.f32.mrf.mxu0
    %v468 = vadd.f32 %v321, %v467
    %v469 = vpop.f32.mrf.mxu0
    %v470 = vadd.f32 %v325, %v469
    %v471 = vpop.f32.mrf.mxu0
    %v472 = vadd.f32 %v321, %v471
    %v473 = vpop.f32.mrf.mxu0
    %v474 = vadd.f32 %v325, %v473
    %475 = vmatprep.mubr.bf16.mxu0 0
    %476 = vmatmul.mubr.bf16.gmra.mxu0 %v121
    %v477 = vpop.f32.mrf.mxu0
    %v478 = vadd.f32 %v321, %v477
    %v479 = vpop.f32.mrf.mxu0
    %v480 = vadd.f32 %v325, %v479
    %v481 = vpop.f32.mrf.mxu0
    %v482 = vadd.f32 %v321, %v481
    %v483 = vpop.f32.mrf.mxu0
    %v484 = vadd.f32 %v325, %v483
    %485 = vmatprep.mubr.bf16.mxu0 0
    %486 = vmatmul.mubr.bf16.gmra.mxu0 %v124
    %v487 = vpop.f32.mrf.mxu0
    %v488 = vadd.f32 %v321, %v487
    %v489 = vpop.f32.mrf.mxu0
    %v490 = vadd.f32 %v325, %v489
    %v491 = vpop.f32.mrf.mxu0
    %v492 = vadd.f32 %v321, %v491
    %v493 = vpop.f32.mrf.mxu0
    %v494 = vadd.f32 %v325, %v493
    %495 = vdwg.mxu0
    %496 = vst [vmem:[#allocation6] sm:$0xff] %v385
    %497 = vst [vmem:[#allocation6 + $0x8] sm:$0xff] %v387
    %498 = vst [vmem:[#allocation6 + $0x10] sm:$0xff] %v458
    %499 = vst [vmem:[#allocation6 + $0x18] sm:$0xff] %v460
    %500 = vst [vmem:[#allocation6 + $0x20] sm:$0xff] %v389
    %501 = vst [vmem:[#allocation6 + $0x28] sm:$0xff] %v391
    %502 = vst [vmem:[#allocation6 + $0x30] sm:$0xff] %v462
    %503 = vst [vmem:[#allocation6 + $0x38] sm:$0xff] %v464
    %504 = vst [vmem:[#allocation6 + $0x40] sm:$0xff] %v395
    %505 = vst [vmem:[#allocation6 + $0x48] sm:$0xff] %v397
    %506 = vst [vmem:[#allocation6 + $0x50] sm:$0xff] %v468
    %507 = vst [vmem:[#allocation6 + $0x58] sm:$0xff] %v470
    %508 = vst [vmem:[#allocation6 + $0x60] sm:$0xff] %v399
    %509 = vst [vmem:[#allocation6 + $0x68] sm:$0xff] %v401
    %510 = vst [vmem:[#allocation6 + $0x70] sm:$0xff] %v472
    %511 = vst [vmem:[#allocation6 + $0x78] sm:$0xff] %v474
    %512 = vst [vmem:[#allocation6 + $0x80] sm:$0xff] %v405
    %513 = vst [vmem:[#allocation6 + $0x88] sm:$0xff] %v407
    %514 = vst [vmem:[#allocation6 + $0x90] sm:$0xff] %v478
    %515 = vst [vmem:[#allocation6 + $0x98] sm:$0xff] %v480
    %516 = vst [vmem:[#allocation6 + $0xa0] sm:$0xff] %v409
    %517 = vst [vmem:[#allocation6 + $0xa8] sm:$0xff] %v411
    %518 = vst [vmem:[#allocation6 + $0xb0] sm:$0xff] %v482
    %519 = vst [vmem:[#allocation6 + $0xb8] sm:$0xff] %v484
    %520 = vst [vmem:[#allocation6 + $0xc0] sm:$0xff] %v415
    %521 = vst [vmem:[#allocation6 + $0xc8] sm:$0xff] %v417
    %522 = vst [vmem:[#allocation6 + $0xd0] sm:$0xff] %v488
    %523 = vst [vmem:[#allocation6 + $0xd8] sm:$0xff] %v490
    %524 = vst [vmem:[#allocation6 + $0xe0] sm:$0xff] %v419
    %525 = vst [vmem:[#allocation6 + $0xe8] sm:$0xff] %v421
    %526 = vst [vmem:[#allocation6 + $0xf0] sm:$0xff] %v492
    %527 = vst [vmem:[#allocation6 + $0xf8] sm:$0xff] %v494
    // Predicated region
    $region26: #{tpu_custom_call.1} parent=1 // pred_check
      _
    $region27: #{tpu_custom_call.1} parent=1 // pred_check_branch
      %529 = sbr.rel (0) target = $region29
    $region28: #{tpu_custom_call.1} parent=1 // pred_region
      %s531 = ssub.s32 4096, 4096
      %532 = vsyncadd [#allocation4], %s531
      %s533 = sshll.u32 [#allocation5], 4
      %s534 = int_to_ptr.vmem [resolvable:$true] %s533
      %539 = dma.vmem_to_hbm [thread:$0]  %s534, 4096, %s5, [#allocation4], 512, 512, 32
    $region29: #{tpu_custom_call.1} parent=1 // pred_fallthru
      _
    // Predicated region
    $region30: #{tpu_custom_call.1} parent=1 // pred_check
      _
    $region31: #{tpu_custom_call.1} parent=1 // pred_check_branch
      %541 = sbr.rel (0) target = $region33
    $region32: #{tpu_custom_call.1} parent=1 // pred_region
      %s543 = ssub.s32 4096, 4096
      %544 = vsyncadd [#allocation7], %s543
      %s545 = sshll.u32 [#allocation6], 4
      %s546 = int_to_ptr.vmem [resolvable:$true] %s545
      %551 = dma.vmem_to_hbm [thread:$0]  %s546, 4096, %s6, [#allocation7], 512, 512, 32
    $region33: #{tpu_custom_call.1} parent=1 // pred_fallthru
      _
    // Predicated region
    $region34: #{tpu_custom_call.1} parent=1 // pred_check
      _
    $region35: #{tpu_custom_call.1} parent=1 // pred_check_branch
      %553 = sbr.rel (0) target = $region37
    $region36: #{tpu_custom_call.1} parent=1 // pred_region
      %554 = dma.done [#allocation4], 4096
    $region37: #{tpu_custom_call.1} parent=1 // pred_fallthru
      _
    // Predicated region
    $region38: #{tpu_custom_call.1} parent=1 // pred_check
      _
    $region39: #{tpu_custom_call.1} parent=1 // pred_check_branch
      %556 = sbr.rel (0) target = $region41
    $region40: #{tpu_custom_call.1} parent=1 // pred_region
      %557 = dma.done [#allocation7], 4096
    $region41: #{tpu_custom_call.1} parent=1 // pred_fallthru
      _
    %558 = vsyncpa [#allocation3], 1
    %559 = vsyncpa [#allocation4], 1
    %560 = vsyncpa [#allocation7], 1

</llo_original>
